<compile_context>
chip_gen: v5e
topology: v5e:2x2
jax: 0.10.0
libtpu: 0.0.40
codegen_flags: <defaults>
</compile_context>

<pallas_src>
import jax
import jax.numpy as jnp
from jax.experimental import pallas as pl
from jax.experimental.pallas import tpu as pltpu


def _cdiv(a, b):
    return -(-a // b)


def _round_up(a, b):
    return _cdiv(a, b) * b


def _mlp_proj_kernel(x_ref, w1_ref, b1_ref, w2_ref, b2_ref, g_ref, beta_ref, o_ref):
    # Linear 1: bf16 x bf16 -> f32 accumulation on the MXU.
    x = x_ref[...].astype(w1_ref.dtype)                      # (TB, clip)
    h = jnp.dot(x, w1_ref[...], preferred_element_type=jnp.float32)
    h = h + b1_ref[...].astype(jnp.float32)

    # GELU (exact / erf form, matching torch.nn.GELU default).
    inv_sqrt2 = jnp.float32(0.7071067811865475)
    h = 0.5 * h * (1.0 + jax.lax.erf(h * inv_sqrt2))

    # Linear 2: cast the f32 intermediate to bf16 for the MXU, accumulate f32.
    y = jnp.dot(h.astype(w2_ref.dtype), w2_ref[...],
                preferred_element_type=jnp.float32)
    y = y + b2_ref[...].astype(jnp.float32)

    # LayerNorm over last dim, eps=1e-5 (biased variance, like PyTorch).
    # Two-pass form: centered before squaring to avoid E[y^2]-E[y]^2 cancellation.
    mean = jnp.mean(y, axis=-1, keepdims=True)
    yc = y - mean
    var = jnp.mean(yc * yc, axis=-1, keepdims=True)
    y_norm = yc * jax.lax.rsqrt(var + jnp.float32(1e-5))
    out = y_norm * g_ref[...].astype(jnp.float32) + beta_ref[...].astype(jnp.float32)

    o_ref[...] = out.astype(o_ref.dtype)


def _choose_block_b(B, *, max_block=512, align=16, min_steps=2):
    """Batch tile: big (pipeline/MXU friendly), 16-aligned (bf16 sublanes),
    128-aligned when large (v5e MXU rows), and at least `min_steps` grid steps
    when B permits so the 'parallel' axis can shard over v7x's 2 TensorCores."""
    if B <= 2 * align:
        return _round_up(max(B, 1), align)
    n_tiles = max(min_steps, _cdiv(B, max_block))
    blk = _cdiv(B, n_tiles)
    a = 128 if blk >= 128 else align
    blk = _round_up(blk, a)
    return max(align, min(blk, max_block))


# Safe on every TPU generation (v7x has only 64 MiB VMEM per TensorCore).
_VMEM_BUDGET_BYTES = 56 << 20


def _fit_block_b_to_vmem(block_b, clip_dim, cross_dim, x_item, out_item, w_item,
                         budget=_VMEM_BUDGET_BYTES):
    """Shrink the batch tile if the resident VMEM estimate would bust the budget."""
    weights = (clip_dim * clip_dim + clip_dim * cross_dim) * w_item
    vecs = (2 * clip_dim + 3 * cross_dim) * 4
    # per-row: double-buffered x/out tiles + f32 intermediates (h, y, temps).
    per_row = 2 * clip_dim * x_item + 2 * cross_dim * out_item \
        + 3 * (clip_dim + cross_dim) * 4
    avail = budget - weights - vecs - (4 << 20)          # compiler scratch slack
    max_rows = max(16, (avail // per_row) // 16 * 16)
    return int(min(block_b, max_rows))


def mlp_proj_model(image_embeds, params, *, block_b=None,
                   weight_dtype=jnp.bfloat16, x_stream_dtype=jnp.bfloat16,
                   out_dtype=None):
    """Runs MLPProjModel.forward via a Pallas TPU kernel.

    image_embeds: (B, clip_dim) array (any float dtype; streamed as bf16)
    params: dict with w1 (clip, clip), b1 (1, clip), w2 (clip, cross),
            b2 (1, cross), gamma (1, cross), beta (1, cross)
    """
    B, clip_dim = image_embeds.shape
    cross_dim = params["w2"].shape[1]
    out_dtype = image_embeds.dtype if out_dtype is None else out_dtype

    # Cast the big weight matrices for streaming; small vectors stay f32.
    # (On v7x, weight_dtype could be an fp8 type to halve weight bytes again.)
    w1 = params["w1"].astype(weight_dtype)
    w2 = params["w2"].astype(weight_dtype)
    b1 = params["b1"].astype(jnp.float32).reshape(1, clip_dim)
    b2 = params["b2"].astype(jnp.float32).reshape(1, cross_dim)
    gamma = params["gamma"].astype(jnp.float32).reshape(1, cross_dim)
    beta = params["beta"].astype(jnp.float32).reshape(1, cross_dim)

    # Stream x in bf16 (ideally the caller already provides bf16 so this is a no-op).
    x = image_embeds if image_embeds.dtype == x_stream_dtype \
        else image_embeds.astype(x_stream_dtype)

    itemsize_w = jnp.dtype(weight_dtype).itemsize
    itemsize_x = jnp.dtype(x_stream_dtype).itemsize
    itemsize_o = jnp.dtype(out_dtype).itemsize

    if block_b is None:
        block_b = _choose_block_b(B)
    block_b = _fit_block_b_to_vmem(block_b, clip_dim, cross_dim,
                                   itemsize_x, itemsize_o, itemsize_w)

    # No wrapper-side padding: ragged last block (reads padded, writes masked).
    grid = (_cdiv(B, block_b),)

    # VMEM footprint: single-buffered weights + double-buffered x/out tiles
    # + f32 intermediates (h, y, temps), plus slack. Capped at the v7x-safe budget.
    resident = (
        (clip_dim * clip_dim + clip_dim * cross_dim) * itemsize_w
        + (2 * clip_dim + 3 * cross_dim) * 4
        + 2 * block_b * clip_dim * itemsize_x
        + 2 * block_b * cross_dim * itemsize_o
        + 3 * block_b * (clip_dim + cross_dim) * 4
    )
    vmem_limit = int(min(max(resident + (4 << 20), 16 << 20), _VMEM_BUDGET_BYTES))

    flops = 2 * B * clip_dim * (clip_dim + cross_dim)
    bytes_accessed = (
        B * clip_dim * itemsize_x                                     # x in
        + (clip_dim * clip_dim + clip_dim * cross_dim) * itemsize_w   # weights
        + (2 * clip_dim + 3 * cross_dim) * 4                          # vectors
        + B * cross_dim * itemsize_o                                  # out
    )
    cost = pl.CostEstimate(flops=flops,
                           transcendentals=B * clip_dim,
                           bytes_accessed=bytes_accessed)

    def _const_spec(shape):
        # Constant block index across the grid -> single-buffer to save VMEM.
        return pl.BlockSpec(shape, lambda i: (0, 0), pipeline_mode=pl.Buffered(1))

    out = pl.pallas_call(
        _mlp_proj_kernel,
        out_shape=jax.ShapeDtypeStruct((B, cross_dim), out_dtype),
        grid_spec=pltpu.PrefetchScalarGridSpec(
            num_scalar_prefetch=0,
            grid=grid,
            in_specs=[
                pl.BlockSpec((block_b, clip_dim), lambda i: (i, 0)),   # x tile
                _const_spec((clip_dim, clip_dim)),                     # w1
                _const_spec((1, clip_dim)),                            # b1
                _const_spec((clip_dim, cross_dim)),                    # w2
                _const_spec((1, cross_dim)),                           # b2
                _const_spec((1, cross_dim)),                           # gamma
                _const_spec((1, cross_dim)),                           # beta
            ],
            out_specs=pl.BlockSpec((block_b, cross_dim), lambda i: (i, 0)),
        ),
        compiler_params=pltpu.CompilerParams(
            dimension_semantics=("parallel",),
            vmem_limit_bytes=vmem_limit,
        ),
        cost_estimate=cost,
    )(x, w1, b1, w2, b2, gamma, beta)

    return out


def init_params(key, clip_dim, cross_dim):
    k1, k2, k3, k4 = jax.random.split(key, 4)
    # Deterministic synthetic init (kaiming-uniform-like scale, not a checkpoint).
    lim1 = 1.0 / jnp.sqrt(clip_dim)
    lim2 = 1.0 / jnp.sqrt(clip_dim)
    return {
        "w1": jax.random.uniform(k1, (clip_dim, clip_dim), jnp.float32, -lim1, lim1),
        "b1": jax.random.uniform(k2, (1, clip_dim), jnp.float32, -lim1, lim1),
        "w2": jax.random.uniform(k3, (clip_dim, cross_dim), jnp.float32, -lim2, lim2),
        "b2": jax.random.uniform(k4, (1, cross_dim), jnp.float32, -lim2, lim2),
        "gamma": jnp.ones((1, cross_dim), jnp.float32),   # LayerNorm default weight
        "beta": jnp.zeros((1, cross_dim), jnp.float32),   # LayerNorm default bias
    }


def _reference(x, p, weight_dtype=jnp.bfloat16):
    """Pure-JAX reference emulating the kernel's bf16-weight / f32-accum math."""
    f32 = jnp.float32
    hp = jax.lax.Precision.HIGHEST
    w1 = p["w1"].astype(weight_dtype).astype(f32)
    w2 = p["w2"].astype(weight_dtype).astype(f32)
    xq = x.astype(weight_dtype).astype(f32)
    h = jnp.dot(xq, w1, precision=hp) + p["b1"]
    h = 0.5 * h * (1.0 + jax.lax.erf(h * jnp.float32(0.7071067811865475)))
    hq = h.astype(weight_dtype).astype(f32)
    y = jnp.dot(hq, w2, precision=hp) + p["b2"]
    mean = jnp.mean(y, axis=-1, keepdims=True)
    var = jnp.mean((y - mean) ** 2, axis=-1, keepdims=True)
    return (y - mean) / jnp.sqrt(var + 1e-5) * p["gamma"] + p["beta"]


if __name__ == "__main__":
    # Small shapes consistent with the module (clip_embeddings_dim -> cross_attention_dim).
    # B deliberately not a multiple of the tile to exercise the ragged-batch path.
    B, CLIP_DIM, CROSS_DIM = 12, 128, 256

    key = jax.random.PRNGKey(0)
    k_x, k_p = jax.random.split(key)
    x = jax.random.normal(k_x, (B, CLIP_DIM), dtype=jnp.float32)
    params = init_params(k_p, CLIP_DIM, CROSS_DIM)

    out = mlp_proj_model(x, params)
    out = jax.block_until_ready(out)

    ref = _reference(x, params, weight_dtype=jnp.bfloat16)
    assert out.shape == (B, CROSS_DIM)
    assert jnp.allclose(out, ref, atol=2e-3, rtol=2e-3), "mismatch vs JAX reference"

    print("KERNEL_OK")
</pallas_src>

<mosaic_0001>
module attributes {stable_mosaic.version = 11 : i64} {
  func.func @_mlp_proj_kernel(%arg0: i32, %arg1: memref<16x128xbf16, #tpu.memory_space<vmem>>, %arg2: memref<128x128xbf16, #tpu.memory_space<vmem>>, %arg3: memref<1x128xf32, #tpu.memory_space<vmem>>, %arg4: memref<128x256xbf16, #tpu.memory_space<vmem>>, %arg5: memref<1x256xf32, #tpu.memory_space<vmem>>, %arg6: memref<1x256xf32, #tpu.memory_space<vmem>>, %arg7: memref<1x256xf32, #tpu.memory_space<vmem>>, %arg8: memref<16x256xf32, #tpu.memory_space<vmem>>) attributes {dimension_semantics = [#tpu.dimension_semantics<parallel>], iteration_bounds = array<i64: 1>, scalar_prefetch = 0 : i64, scratch_operands = 0 : i64, tpu.core_type = #tpu.core_type<tc>, window_params = [{transform_indices = @transform_0, window_bounds = array<i64: 16, 128>}, {pipeline_mode = #tpu.pipeline_mode<synchronous>, transform_indices = @transform_1, window_bounds = array<i64: 128, 128>}, {pipeline_mode = #tpu.pipeline_mode<synchronous>, transform_indices = @transform_2, window_bounds = array<i64: 1, 128>}, {pipeline_mode = #tpu.pipeline_mode<synchronous>, transform_indices = @transform_3, window_bounds = array<i64: 128, 256>}, {pipeline_mode = #tpu.pipeline_mode<synchronous>, transform_indices = @transform_4, window_bounds = array<i64: 1, 256>}, {pipeline_mode = #tpu.pipeline_mode<synchronous>, transform_indices = @transform_5, window_bounds = array<i64: 1, 256>}, {pipeline_mode = #tpu.pipeline_mode<synchronous>, transform_indices = @transform_6, window_bounds = array<i64: 1, 256>}, {transform_indices = @transform_7, window_bounds = array<i64: 16, 256>}]} {
    %c0 = arith.constant 0 : index
    %c0_0 = arith.constant 0 : index
    %0 = vector.load %arg1[%c0, %c0_0] : memref<16x128xbf16, #tpu.memory_space<vmem>>, vector<16x128xbf16>
    %c0_1 = arith.constant 0 : index
    %c0_2 = arith.constant 0 : index
    %1 = vector.load %arg2[%c0_1, %c0_2] : memref<128x128xbf16, #tpu.memory_space<vmem>>, vector<128x128xbf16>
    %cst = arith.constant dense<0.000000e+00> : vector<16x128xf32>
    %2 = tpu.matmul %0, %1, %cst {dimension_numbers = #tpu.dot_dimension_numbers<[1], [0], [0], [1], [0, 0, 1, 1], [], []>} : vector<16x128xbf16>, vector<128x128xbf16>, vector<16x128xf32> -> vector<16x128xf32>
    %c0_3 = arith.constant 0 : index
    %c0_4 = arith.constant 0 : index
    %3 = vector.load %arg3[%c0_3, %c0_4] : memref<1x128xf32, #tpu.memory_space<vmem>>, vector<1x128xf32>
    %4 = vector.broadcast %3 : vector<1x128xf32> to vector<16x128xf32>
    %5 = arith.addf %2, %4 : vector<16x128xf32>
    %cst_5 = arith.constant 5.000000e-01 : f32
    %6 = vector.broadcast %cst_5 : f32 to vector<16x128xf32>
    %7 = arith.mulf %6, %5 : vector<16x128xf32>
    %cst_6 = arith.constant 0.707106769 : f32
    %8 = vector.broadcast %cst_6 : f32 to vector<16x128xf32>
    %9 = arith.mulf %5, %8 : vector<16x128xf32>
    %10 = math.erf %9 : vector<16x128xf32>
    %cst_7 = arith.constant 1.000000e+00 : f32
    %11 = vector.broadcast %cst_7 : f32 to vector<16x128xf32>
    %12 = arith.addf %11, %10 : vector<16x128xf32>
    %13 = arith.mulf %7, %12 : vector<16x128xf32>
    %14 = arith.truncf %13 : vector<16x128xf32> to vector<16x128xbf16>
    %c0_8 = arith.constant 0 : index
    %c0_9 = arith.constant 0 : index
    %15 = vector.load %arg4[%c0_8, %c0_9] : memref<128x256xbf16, #tpu.memory_space<vmem>>, vector<128x256xbf16>
    %cst_10 = arith.constant dense<0.000000e+00> : vector<16x256xf32>
    %16 = tpu.matmul %14, %15, %cst_10 {dimension_numbers = #tpu.dot_dimension_numbers<[1], [0], [0], [1], [0, 0, 1, 1], [], []>} : vector<16x128xbf16>, vector<128x256xbf16>, vector<16x256xf32> -> vector<16x256xf32>
    %c0_11 = arith.constant 0 : index
    %c0_12 = arith.constant 0 : index
    %17 = vector.load %arg5[%c0_11, %c0_12] : memref<1x256xf32, #tpu.memory_space<vmem>>, vector<1x256xf32>
    %18 = vector.broadcast %17 : vector<1x256xf32> to vector<16x256xf32>
    %19 = arith.addf %16, %18 : vector<16x256xf32>
    %cst_13 = arith.constant dense<0.000000e+00> : vector<16xf32>
    %20 = vector.multi_reduction <add>, %19, %cst_13 [1] : vector<16x256xf32> to vector<16xf32>
    %21 = vector.shape_cast %20 : vector<16xf32> to vector<16x1xf32>
    %cst_14 = arith.constant 2.560000e+02 : f32
    %22 = vector.broadcast %cst_14 : f32 to vector<16x1xf32>
    %23 = arith.divf %21, %22 : vector<16x1xf32>
    %24 = vector.broadcast %23 : vector<16x1xf32> to vector<16x256xf32>
    %25 = arith.subf %19, %24 : vector<16x256xf32>
    %26 = arith.mulf %25, %25 : vector<16x256xf32>
    %cst_15 = arith.constant dense<0.000000e+00> : vector<16xf32>
    %27 = vector.multi_reduction <add>, %26, %cst_15 [1] : vector<16x256xf32> to vector<16xf32>
    %28 = vector.shape_cast %27 : vector<16xf32> to vector<16x1xf32>
    %cst_16 = arith.constant 2.560000e+02 : f32
    %29 = vector.broadcast %cst_16 : f32 to vector<16x1xf32>
    %30 = arith.divf %28, %29 : vector<16x1xf32>
    %cst_17 = arith.constant 9.99999974E-6 : f32
    %31 = vector.broadcast %cst_17 : f32 to vector<16x1xf32>
    %32 = arith.addf %30, %31 : vector<16x1xf32>
    %33 = math.rsqrt %32 : vector<16x1xf32>
    %34 = vector.broadcast %33 : vector<16x1xf32> to vector<16x256xf32>
    %35 = arith.mulf %25, %34 : vector<16x256xf32>
    %c0_18 = arith.constant 0 : index
    %c0_19 = arith.constant 0 : index
    %36 = vector.load %arg6[%c0_18, %c0_19] : memref<1x256xf32, #tpu.memory_space<vmem>>, vector<1x256xf32>
    %37 = vector.broadcast %36 : vector<1x256xf32> to vector<16x256xf32>
    %38 = arith.mulf %35, %37 : vector<16x256xf32>
    %c0_20 = arith.constant 0 : index
    %c0_21 = arith.constant 0 : index
    %39 = vector.load %arg7[%c0_20, %c0_21] : memref<1x256xf32, #tpu.memory_space<vmem>>, vector<1x256xf32>
    %40 = vector.broadcast %39 : vector<1x256xf32> to vector<16x256xf32>
    %41 = arith.addf %38, %40 : vector<16x256xf32>
    %c0_22 = arith.constant 0 : index
    %c0_23 = arith.constant 0 : index
    %42 = vector.load %arg8[%c0_22, %c0_23] : memref<16x256xf32, #tpu.memory_space<vmem>>, vector<16x256xf32>
    tpu.vector_store %arg8[%c0_22, %c0_23], %41 {strides = array<i32>} : memref<16x256xf32, #tpu.memory_space<vmem>>, vector<16x256xf32>,
    return
  }
  func.func @transform_0(%arg0: i32) -> (i32, i32) {
    %c0_i32 = arith.constant 0 : i32
    %c0_i32_0 = arith.constant 0 : i32
    return %arg0, %c0_i32 : i32, i32
  }
  func.func @transform_1(%arg0: i32) -> (i32, i32) {
    %c0_i32 = arith.constant 0 : i32
    %c0_i32_0 = arith.constant 0 : i32
    %c0_i32_1 = arith.constant 0 : i32
    return %c0_i32, %c0_i32_0 : i32, i32
  }
  func.func @transform_2(%arg0: i32) -> (i32, i32) {
    %c0_i32 = arith.constant 0 : i32
    %c0_i32_0 = arith.constant 0 : i32
    %c0_i32_1 = arith.constant 0 : i32
    return %c0_i32, %c0_i32_0 : i32, i32
  }
  func.func @transform_3(%arg0: i32) -> (i32, i32) {
    %c0_i32 = arith.constant 0 : i32
    %c0_i32_0 = arith.constant 0 : i32
    %c0_i32_1 = arith.constant 0 : i32
    return %c0_i32, %c0_i32_0 : i32, i32
  }
  func.func @transform_4(%arg0: i32) -> (i32, i32) {
    %c0_i32 = arith.constant 0 : i32
    %c0_i32_0 = arith.constant 0 : i32
    %c0_i32_1 = arith.constant 0 : i32
    return %c0_i32, %c0_i32_0 : i32, i32
  }
  func.func @transform_5(%arg0: i32) -> (i32, i32) {
    %c0_i32 = arith.constant 0 : i32
    %c0_i32_0 = arith.constant 0 : i32
    %c0_i32_1 = arith.constant 0 : i32
    return %c0_i32, %c0_i32_0 : i32, i32
  }
  func.func @transform_6(%arg0: i32) -> (i32, i32) {
    %c0_i32 = arith.constant 0 : i32
    %c0_i32_0 = arith.constant 0 : i32
    %c0_i32_1 = arith.constant 0 : i32
    return %c0_i32, %c0_i32_0 : i32, i32
  }
  func.func @transform_7(%arg0: i32) -> (i32, i32) {
    %c0_i32 = arith.constant 0 : i32
    %c0_i32_0 = arith.constant 0 : i32
    return %arg0, %c0_i32 : i32, i32
  }
}

</mosaic_0001>

<llo_original>
// kernel: tpu_custom_call.1
$region0: #{tpu_custom_call.1}
  #allocation0 [shape = 'u32[]', space=smem, size = 0x4, offset = 0x4, fixed_abs, tag = 'smem constant byte address 0x4 - core index']
  #allocation1 [shape = 'u32[72,128]{1,0:T(1,128)}', space=vmem, size = 0x9000, scoped, tag = 'internal scratch']
  %s0 = inlined_call_operand.hbm [shape: bf16[12,128], index: 0, kind: input, shape index: {}]
  %s1 = inlined_call_operand.hbm [shape: bf16[128,128], index: 1, kind: input, shape index: {}]
  %s2 = inlined_call_operand.hbm [shape: f32[1,128], index: 2, kind: input, shape index: {}]
  %s3 = inlined_call_operand.hbm [shape: bf16[128,256], index: 3, kind: input, shape index: {}]
  %s4 = inlined_call_operand.vmem [shape: f32[1,256], index: 4, kind: input, shape index: {}]
  %s5 = inlined_call_operand.vmem [shape: f32[1,256], index: 5, kind: input, shape index: {}]
  %s6 = inlined_call_operand.hbm [shape: f32[1,256], index: 6, kind: input, shape index: {}]
  %s7 = inlined_call_operand.hbm [shape: f32[12,256], index: 7, kind: output, shape index: {}]
  %s8 = sld [smem:[#allocation0]]
  $region58: #{tpu_custom_call.1} parent=0
    _
  %s10 = ssub.s32 1, %s8
  %s11 = scalar_select 0, %s10, %s8
  $region1: #{tpu_custom_call.1} parent=0
    #allocation2 [shape = 'u8[4096]{0}', space=vmem, size = 0x1000, scoped, tag = 'input window, operand 0, single buffered']
    #allocation3 [shape = 's32[1]{0}', space=sflag, size = 0x4, scoped, tag = 'scoped memory for tpu_custom_call.1']
    #allocation4 [shape = 's32[1]{0}', space=sflag, size = 0x4, scoped, tag = 'scoped memory for tpu_custom_call.1']
    #allocation5 [shape = 'u8[32768]{0}', space=vmem, size = 0x8000, scoped, tag = 'input window, operand 1, single buffered']
    #allocation6 [shape = 's32[1]{0}', space=sflag, size = 0x4, scoped, tag = 'scoped memory for tpu_custom_call.1']
    #allocation7 [shape = 'u8[512]{0}', space=vmem, size = 0x400, scoped, tag = 'input window, operand 2, single buffered']
    #allocation8 [shape = 'u8[65536]{0}', space=vmem, size = 0x10000, scoped, tag = 'input window, operand 3, single buffered']
    #allocation9 [shape = 's32[1]{0}', space=sflag, size = 0x4, scoped, tag = 'scoped memory for tpu_custom_call.1']
    #allocation10 [shape = 'u8[1024]{0}', space=vmem, size = 0x400, scoped, tag = 'input window, operand 6, single buffered']
    #allocation11 [shape = 'u8[16384]{0}', space=vmem, size = 0x4000, scoped, tag = 'output window, operand 0, single buffered']
    %12 = vsyncpa [#allocation3], 0
    %13 = vsyncpa [#allocation6], 0
    %14 = vsyncpa [#allocation9], 0
    %15 = vsyncpa [#allocation4], 0
    // Predicated region
    $region2: #{tpu_custom_call.1} parent=1 // pred_check
      _
    $region3: #{tpu_custom_call.1} parent=1 // pred_check_branch
      %17 = sbr.rel (0) target = $region5
    $region4: #{tpu_custom_call.1} parent=1 // pred_region
      %19 = vsyncadd [#allocation3], 0
      %s20 = sshll.u32 %s0, 4
      %s21 = int_to_ptr.hbm [resolvable:$true] %s20
      %s22 = sshll.u32 [#allocation2], 4
      %s23 = int_to_ptr.vmem [resolvable:$true] %s22
      %28 = dma.hbm_to_vmem [thread:$0]  %s21, 128, %s23, [#allocation3], 64, 64, 4
    $region5: #{tpu_custom_call.1} parent=1 // pred_fallthru
      _
    // Predicated region
    $region6: #{tpu_custom_call.1} parent=1 // pred_check
      _
    $region7: #{tpu_custom_call.1} parent=1 // pred_check_branch
      %30 = sbr.rel (0) target = $region9
    $region8: #{tpu_custom_call.1} parent=1 // pred_region
      %32 = vsyncadd [#allocation6], 0
      %s33 = sshll.u32 %s1, 4
      %s34 = int_to_ptr.hbm [resolvable:$true] %s33
      %s35 = sshll.u32 [#allocation5], 4
      %s36 = int_to_ptr.vmem [resolvable:$true] %s35
      %41 = dma.hbm_to_vmem [thread:$0]  %s34, 1024, %s36, [#allocation6], 64, 64, 4
    $region9: #{tpu_custom_call.1} parent=1 // pred_fallthru
      _
    // Predicated region
    $region10: #{tpu_custom_call.1} parent=1 // pred_check
      _
    $region11: #{tpu_custom_call.1} parent=1 // pred_check_branch
      %43 = sbr.rel (0) target = $region13
    $region12: #{tpu_custom_call.1} parent=1 // pred_region
      %45 = vsyncadd [#allocation6], 0
      %s47 = sshll.u32 %s2, 4
      %s48 = int_to_ptr.hbm [resolvable:$true] %s47
      %s49 = sshll.u32 [#allocation7], 4
      %s50 = int_to_ptr.vmem [resolvable:$true] %s49
      %52 = dma.hbm_to_vmem [thread:$0]  %s48, 16, %s50, [#allocation6]
    $region13: #{tpu_custom_call.1} parent=1 // pred_fallthru
      _
    // Predicated region
    $region14: #{tpu_custom_call.1} parent=1 // pred_check
      _
    $region15: #{tpu_custom_call.1} parent=1 // pred_check_branch
      %54 = sbr.rel (0) target = $region17
    $region16: #{tpu_custom_call.1} parent=1 // pred_region
      %56 = vsyncadd [#allocation9], 0
      %s57 = sshll.u32 %s3, 4
      %s58 = int_to_ptr.hbm [resolvable:$true] %s57
      %s59 = sshll.u32 [#allocation8], 4
      %s60 = int_to_ptr.vmem [resolvable:$true] %s59
      %65 = dma.hbm_to_vmem [thread:$0]  %s58, 2048, %s60, [#allocation9], 128, 128, 8
    $region17: #{tpu_custom_call.1} parent=1 // pred_fallthru
      _
    // Predicated region
    $region18: #{tpu_custom_call.1} parent=1 // pred_check
      _
    $region19: #{tpu_custom_call.1} parent=1 // pred_check_branch
      %67 = sbr.rel (0) target = $region21
    $region20: #{tpu_custom_call.1} parent=1 // pred_region
      _
    $region21: #{tpu_custom_call.1} parent=1 // pred_fallthru
      _
    // Predicated region
    $region22: #{tpu_custom_call.1} parent=1 // pred_check
      _
    $region23: #{tpu_custom_call.1} parent=1 // pred_check_branch
      %69 = sbr.rel (0) target = $region25
    $region24: #{tpu_custom_call.1} parent=1 // pred_region
      _
    $region25: #{tpu_custom_call.1} parent=1 // pred_fallthru
      _
    // Predicated region
    $region26: #{tpu_custom_call.1} parent=1 // pred_check
      _
    $region27: #{tpu_custom_call.1} parent=1 // pred_check_branch
      %71 = sbr.rel (0) target = $region29
    $region28: #{tpu_custom_call.1} parent=1 // pred_region
      %73 = vsyncadd [#allocation9], 0
      %s75 = sshll.u32 %s6, 4
      %s76 = int_to_ptr.hbm [resolvable:$true] %s75
      %s77 = sshll.u32 [#allocation10], 4
      %s78 = int_to_ptr.vmem [resolvable:$true] %s77
      %80 = dma.hbm_to_vmem [thread:$0]  %s76, 32, %s78, [#allocation9]
    $region29: #{tpu_custom_call.1} parent=1 // pred_fallthru
      _
    // Predicated region
    $region30: #{tpu_custom_call.1} parent=1 // pred_check
      _
    $region31: #{tpu_custom_call.1} parent=1 // pred_check_branch
      %82 = sbr.rel (0) target = $region33
    $region32: #{tpu_custom_call.1} parent=1 // pred_region
      %84 = dma.done [#allocation3], 128
    $region33: #{tpu_custom_call.1} parent=1 // pred_fallthru
      _
    // Predicated region
    $region34: #{tpu_custom_call.1} parent=1 // pred_check
      _
    $region35: #{tpu_custom_call.1} parent=1 // pred_check_branch
      %86 = sbr.rel (0) target = $region37
    $region36: #{tpu_custom_call.1} parent=1 // pred_region
      %88 = dma.done [#allocation6], 1024
    $region37: #{tpu_custom_call.1} parent=1 // pred_fallthru
      _
    // Predicated region
    $region38: #{tpu_custom_call.1} parent=1 // pred_check
      _
    $region39: #{tpu_custom_call.1} parent=1 // pred_check_branch
      %90 = sbr.rel (0) target = $region41
    $region40: #{tpu_custom_call.1} parent=1 // pred_region
      %92 = dma.done [#allocation6], 16
    $region41: #{tpu_custom_call.1} parent=1 // pred_fallthru
      _
    // Predicated region
    $region42: #{tpu_custom_call.1} parent=1 // pred_check
      _
    $region43: #{tpu_custom_call.1} parent=1 // pred_check_branch
      %94 = sbr.rel (0) target = $region45
    $region44: #{tpu_custom_call.1} parent=1 // pred_region
      %96 = dma.done [#allocation9], 2048
    $region45: #{tpu_custom_call.1} parent=1 // pred_fallthru
      _
    // Predicated region
    $region46: #{tpu_custom_call.1} parent=1 // pred_check
      _
    $region47: #{tpu_custom_call.1} parent=1 // pred_check_branch
      %98 = sbr.rel (0) target = $region49
    $region48: #{tpu_custom_call.1} parent=1 // pred_region
      %100 = dma.done [#allocation9], 32
    $region49: #{tpu_custom_call.1} parent=1 // pred_fallthru
      _
    %v101 = vld [vmem:[#allocation2] sm:$0xf]
    %v102 = vld [vmem:[#allocation2 + $0x4] sm:$0xf]
    %v103 = vld [vmem:[#allocation5] sm:$0xf]
    %v104 = vld [vmem:[#allocation5 + $0x4] sm:$0xf]
    %v105 = vld [vmem:[#allocation5 + $0x8] sm:$0xf]
    %v106 = vld [vmem:[#allocation5 + $0xc] sm:$0xf]
    %v107 = vld [vmem:[#allocation5 + $0x10] sm:$0xf]
    %v108 = vld [vmem:[#allocation5 + $0x14] sm:$0xf]
    %v109 = vld [vmem:[#allocation5 + $0x18] sm:$0xf]
    %v110 = vld [vmem:[#allocation5 + $0x1c] sm:$0xf]
    %v111 = vld [vmem:[#allocation5 + $0x20] sm:$0xf]
    %v112 = vld [vmem:[#allocation5 + $0x24] sm:$0xf]
    %v113 = vld [vmem:[#allocation5 + $0x28] sm:$0xf]
    %v114 = vld [vmem:[#allocation5 + $0x2c] sm:$0xf]
    %v115 = vld [vmem:[#allocation5 + $0x30] sm:$0xf]
    %v116 = vld [vmem:[#allocation5 + $0x34] sm:$0xf]
    %v117 = vld [vmem:[#allocation5 + $0x38] sm:$0xf]
    %v118 = vld [vmem:[#allocation5 + $0x3c] sm:$0xf]
    %v119 = vld [vmem:[#allocation7] sm:$0x1]
    %v121 = vperm.slane %v119, 0
    %v125 = vunpack.c.l.b16 %v101
    %v126 = vunpack.c.l.b16 %v102
    %v127 = vpack.c.b16 %v126, %v125
    %v145 = vunpack.c.l.b16 %v103
    %v146 = vunpack.c.l.b16 %v104
    %v147 = vunpack.c.l.b16 %v105
    %v148 = vunpack.c.l.b16 %v106
    %v149 = vunpack.c.l.b16 %v107
    %v150 = vunpack.c.l.b16 %v108
    %v151 = vunpack.c.l.b16 %v109
    %v152 = vunpack.c.l.b16 %v110
    %v153 = vunpack.c.l.b16 %v111
    %v154 = vunpack.c.l.b16 %v112
    %v155 = vunpack.c.l.b16 %v113
    %v156 = vunpack.c.l.b16 %v114
    %v157 = vunpack.c.l.b16 %v115
    %v158 = vunpack.c.l.b16 %v116
    %v159 = vunpack.c.l.b16 %v117
    %v160 = vunpack.c.l.b16 %v118
    %v161 = vpack.c.b16 %v146, %v145
    %v162 = vpack.c.b16 %v148, %v147
    %v163 = vpack.c.b16 %v150, %v149
    %v164 = vpack.c.b16 %v152, %v151
    %v165 = vpack.c.b16 %v154, %v153
    %v166 = vpack.c.b16 %v156, %v155
    %v167 = vpack.c.b16 %v158, %v157
    %v168 = vpack.c.b16 %v160, %v159
    %177 = vmatpush.bf16.msra.mxu0 %v168
    %178 = vmatpush.bf16.msra.mxu0 %v167
    %179 = vmatpush.bf16.msra.mxu0 %v166
    %180 = vmatpush.bf16.msra.mxu0 %v165
    %181 = vmatpush.bf16.msra.mxu0 %v164
    %182 = vmatpush.bf16.msra.mxu0 %v163
    %183 = vmatpush.bf16.msra.mxu0 %v162
    %184 = vmatpush.bf16.msra.mxu0 %v161
    %185 = vmatmul.bf16.gmra.mxu0 %v127
    %v186 = vpop.f32.mrf.mxu0
    %v187 = vadd.f32 %v121, %v186
    %v188 = vpop.f32.mrf.mxu0
    %v189 = vadd.f32 %v121, %v188
    %190 = vdwg.mxu0
    %v191 = vmul.f32 %v187, 0.5
    %v192 = vmul.f32 %v189, 0.5
    %v193 = vmul.f32 %v187, 0.70710677
    %v194 = vmul.f32 %v189, 0.70710677
    %v195 = vmul.f32 %v193, %v193
    %v196 = vmin.f32 16.0, %v195
    %v197 = vmul.f32 %v196, 2.1237322e-06
    %v198 = vadd.f32 %v197, 0.00028619796
    %v199 = vmul.f32 %v196, %v198
    %v200 = vadd.f32 %v199, 0.0036580483
    %v201 = vmul.f32 %v196, %v200
    %v202 = vadd.f32 %v201, 0.05243302
    %v203 = vmul.f32 %v196, %v202
    %v204 = vadd.f32 %v203, 0.18741608
    %v205 = vmul.f32 %v196, %v204
    %v206 = vadd.f32 %v205, 1.1283791
    %v207 = vmul.f32 %v193, %v206
    %v208 = vmul.f32 %v196, 3.8918573e-05
    %v209 = vadd.f32 %v208, 0.001143296
    %v210 = vmul.f32 %v196, %v209
    %v211 = vadd.f32 %v210, 0.014752088
    %v212 = vmul.f32 %v196, %v211
    %v213 = vadd.f32 %v212, 0.112945676
    %v214 = vmul.f32 %v196, %v213
    %v215 = vadd.f32 %v214, 0.4994258
    %v216 = vmul.f32 %v196, %v215
    %v217 = vadd.f32 %v216, 1.0
    %v218 = vrcp.pop %v217
    %v219 = vmul.f32 %v217, %v218
    %v220 = vsub.f32 1.0, %v219
    %v221 = vmul.f32 %v218, %v220
    %v222 = vadd.f32 %v218, %v221
    %vm223 = vweird.f32 %v217
    %vm224 = vweird.f32 %v218
    %vm225 = vmor %vm223, %vm224
    %v226 = vsel %vm225, %v218, %v222
    %v227 = vand.u32 2147483647, %v217
    %vm228 = vcmp.eq.f32.partialorder %v227, 8.507059e+37
    %v229 = vand.u32 %v217, 2147483648
    %v230 = vor.u32 1.1754944e-38, %v229
    %v231 = vsel %vm228, %v230, %v226
    %v232 = vmul.f32 %v207, %v231
    %v233 = vmin.f32 %v232, 1.0
    %v234 = vmax.f32 %v233, -1.0
    %v235 = vmul.f32 %v194, %v194
    %v236 = vmin.f32 16.0, %v235
    %v237 = vmul.f32 %v236, 2.1237322e-06
    %v238 = vadd.f32 %v237, 0.00028619796
    %v239 = vmul.f32 %v236, %v238
    %v240 = vadd.f32 %v239, 0.0036580483
    %v241 = vmul.f32 %v236, %v240
    %v242 = vadd.f32 %v241, 0.05243302
    %v243 = vmul.f32 %v236, %v242
    %v244 = vadd.f32 %v243, 0.18741608
    %v245 = vmul.f32 %v236, %v244
    %v246 = vadd.f32 %v245, 1.1283791
    %v247 = vmul.f32 %v194, %v246
    %v248 = vmul.f32 %v236, 3.8918573e-05
    %v249 = vadd.f32 %v248, 0.001143296
    %v250 = vmul.f32 %v236, %v249
    %v251 = vadd.f32 %v250, 0.014752088
    %v252 = vmul.f32 %v236, %v251
    %v253 = vadd.f32 %v252, 0.112945676
    %v254 = vmul.f32 %v236, %v253
    %v255 = vadd.f32 %v254, 0.4994258
    %v256 = vmul.f32 %v236, %v255
    %v257 = vadd.f32 %v256, 1.0
    %v258 = vrcp.pop %v257
    %v259 = vmul.f32 %v257, %v258
    %v260 = vsub.f32 1.0, %v259
    %v261 = vmul.f32 %v258, %v260
    %v262 = vadd.f32 %v258, %v261
    %vm263 = vweird.f32 %v257
    %vm264 = vweird.f32 %v258
    %vm265 = vmor %vm263, %vm264
    %v266 = vsel %vm265, %v258, %v262
    %v267 = vand.u32 2147483647, %v257
    %vm268 = vcmp.eq.f32.partialorder %v267, 8.507059e+37
    %v269 = vand.u32 %v257, 2147483648
    %v270 = vor.u32 1.1754944e-38, %v269
    %v271 = vsel %vm268, %v270, %v266
    %v272 = vmul.f32 %v247, %v271
    %v273 = vmin.f32 %v272, 1.0
    %v274 = vmax.f32 %v273, -1.0
    %v275 = vadd.f32 %v234, 1.0
    %v276 = vadd.f32 %v274, 1.0
    %v277 = vmul.f32 %v191, %v275
    %v278 = vmul.f32 %v192, %v276
    %v279 = vpack.c.bf16 %v278, %v277
    %v280 = vld [vmem:[#allocation8] sm:$0xff]
    %v281 = vld [vmem:[#allocation8 + $0x8] sm:$0xff]
    %v282 = vld [vmem:[#allocation8 + $0x10] sm:$0xff]
    %v283 = vld [vmem:[#allocation8 + $0x18] sm:$0xff]
    %v284 = vld [vmem:[#allocation8 + $0x20] sm:$0xff]
    %v285 = vld [vmem:[#allocation8 + $0x28] sm:$0xff]
    %v286 = vld [vmem:[#allocation8 + $0x30] sm:$0xff]
    %v287 = vld [vmem:[#allocation8 + $0x38] sm:$0xff]
    %v288 = vld [vmem:[#allocation8 + $0x40] sm:$0xff]
    %v289 = vld [vmem:[#allocation8 + $0x48] sm:$0xff]
    %v290 = vld [vmem:[#allocation8 + $0x50] sm:$0xff]
    %v291 = vld [vmem:[#allocation8 + $0x58] sm:$0xff]
    %v292 = vld [vmem:[#allocation8 + $0x60] sm:$0xff]
    %v293 = vld [vmem:[#allocation8 + $0x68] sm:$0xff]
    %v294 = vld [vmem:[#allocation8 + $0x70] sm:$0xff]
    %v295 = vld [vmem:[#allocation8 + $0x78] sm:$0xff]
    %v296 = vld [vmem:[%s4] sm:$0x3]
    %v298 = vperm.slane %v296, 0
    %v299 = vperm.slane %v296, 1
    %v318 = vunpack.c.l.b16 %v280
    %v319 = vunpack.c.h.b16 %v280
    %v320 = vunpack.c.l.b16 %v281
    %v321 = vunpack.c.h.b16 %v281
    %v322 = vunpack.c.l.b16 %v282
    %v323 = vunpack.c.h.b16 %v282
    %v324 = vunpack.c.l.b16 %v283
    %v325 = vunpack.c.h.b16 %v283
    %v326 = vunpack.c.l.b16 %v284
    %v327 = vunpack.c.h.b16 %v284
    %v328 = vunpack.c.l.b16 %v285
    %v329 = vunpack.c.h.b16 %v285
    %v330 = vunpack.c.l.b16 %v286
    %v331 = vunpack.c.h.b16 %v286
    %v332 = vunpack.c.l.b16 %v287
    %v333 = vunpack.c.h.b16 %v287
    %v334 = vunpack.c.l.b16 %v288
    %v335 = vunpack.c.h.b16 %v288
    %v336 = vunpack.c.l.b16 %v289
    %v337 = vunpack.c.h.b16 %v289
    %v338 = vunpack.c.l.b16 %v290
    %v339 = vunpack.c.h.b16 %v290
    %v340 = vunpack.c.l.b16 %v291
    %v341 = vunpack.c.h.b16 %v291
    %v342 = vunpack.c.l.b16 %v292
    %v343 = vunpack.c.h.b16 %v292
    %v344 = vunpack.c.l.b16 %v293
    %v345 = vunpack.c.h.b16 %v293
    %v346 = vunpack.c.l.b16 %v294
    %v347 = vunpack.c.h.b16 %v294
    %v348 = vunpack.c.l.b16 %v295
    %v349 = vunpack.c.h.b16 %v295
    %v350 = vpack.c.b16 %v320, %v318
    %v351 = vpack.c.b16 %v321, %v319
    %v352 = vpack.c.b16 %v324, %v322
    %v353 = vpack.c.b16 %v325, %v323
    %v354 = vpack.c.b16 %v328, %v326
    %v355 = vpack.c.b16 %v329, %v327
    %v356 = vpack.c.b16 %v332, %v330
    %v357 = vpack.c.b16 %v333, %v331
    %v358 = vpack.c.b16 %v336, %v334
    %v359 = vpack.c.b16 %v337, %v335
    %v360 = vpack.c.b16 %v340, %v338
    %v361 = vpack.c.b16 %v341, %v339
    %v362 = vpack.c.b16 %v344, %v342
    %v363 = vpack.c.b16 %v345, %v343
    %v364 = vpack.c.b16 %v348, %v346
    %v365 = vpack.c.b16 %v349, %v347
    %382 = vmatpush.bf16.msra.mxu0 %v364
    %383 = vmatpush.bf16.msra.mxu0 %v362
    %384 = vmatpush.bf16.msra.mxu0 %v360
    %385 = vmatpush.bf16.msra.mxu0 %v358
    %386 = vmatpush.bf16.msra.mxu0 %v356
    %387 = vmatpush.bf16.msra.mxu0 %v354
    %388 = vmatpush.bf16.msra.mxu0 %v352
    %389 = vmatpush.bf16.msra.mxu0 %v350
    %390 = vmatmul.bf16.gmra.mxu0 %v279
    %v391 = vpop.f32.mrf.mxu0
    %v392 = vadd.f32 %v298, %v391
    %v393 = vpop.f32.mrf.mxu0
    %v394 = vadd.f32 %v298, %v393
    %395 = vdwg.mxu0
    %396 = vmatpush.bf16.msra.mxu0 %v365
    %397 = vmatpush.bf16.msra.mxu0 %v363
    %398 = vmatpush.bf16.msra.mxu0 %v361
    %399 = vmatpush.bf16.msra.mxu0 %v359
    %400 = vmatpush.bf16.msra.mxu0 %v357
    %401 = vmatpush.bf16.msra.mxu0 %v355
    %402 = vmatpush.bf16.msra.mxu0 %v353
    %403 = vmatpush.bf16.msra.mxu0 %v351
    %404 = vmatmul.bf16.gmra.mxu0 %v279
    %v405 = vpop.f32.mrf.mxu0
    %v406 = vadd.f32 %v299, %v405
    %v407 = vpop.f32.mrf.mxu0
    %v408 = vadd.f32 %v299, %v407
    %409 = vdwg.mxu0
    %v410 = vadd.f32 %v392, %v406
    %411 = vadd.xlane.f32.xlu0 %v410
    %v412 = vpop.xlane.xlu0 %411
    %v413 = vadd.f32 %v394, %v408
    %414 = vadd.xlane.f32.xlu0 %v413
    %v415 = vpop.xlane.xlu0 %414
    %v416 = vrcp.pop 256.0
    %v417 = vmul.f32 256.0, %v416
    %v418 = vsub.f32 1.0, %v417
    %v419 = vmul.f32 %v416, %v418
    %v420 = vadd.f32 %v416, %v419
    %vm421 = vweird.f32 %v416
    %v422 = vsel %vm421, %v416, %v420
    %v423 = vmul.f32 %v412, %v422
    %v424 = vmul.f32 %v415, %v422
    %v425 = vsub.f32 %v392, %v423
    %v426 = vsub.f32 %v406, %v423
    %v427 = vsub.f32 %v394, %v424
    %v428 = vsub.f32 %v408, %v424
    %v429 = vmul.f32 %v425, %v425
    %v430 = vmul.f32 %v426, %v426
    %v431 = vmul.f32 %v427, %v427
    %v432 = vmul.f32 %v428, %v428
    %v433 = vadd.f32 %v429, %v430
    %434 = vadd.xlane.f32.xlu0 %v433
    %v435 = vpop.xlane.xlu0 %434
    %v436 = vadd.f32 %v431, %v432
    %437 = vadd.xlane.f32.xlu0 %v436
    %v438 = vpop.xlane.xlu0 %437
    %v439 = vmul.f32 %v435, %v422
    %v440 = vmul.f32 %v438, %v422
    %v441 = vadd.f32 %v439, 1e-05
    %v442 = vadd.f32 %v440, 1e-05
    %v443 = vrsqrt.pop %v441
    %v444 = vmul.f32 %v443, %v441
    %v445 = vmul.f32 %v444, %v443
    %v446 = vmul.f32 0.5, %v445
    %v447 = vsub.f32 1.5, %v446
    %v448 = vmul.f32 %v443, %v447
    %vm449 = vweird.f32 %v441
    %vm450 = vweird.f32 %v443
    %vm451 = vmor %vm449, %vm450
    %v452 = vsel %vm451, %v443, %v448
    %v453 = vrsqrt.pop %v442
    %v454 = vmul.f32 %v453, %v442
    %v455 = vmul.f32 %v454, %v453
    %v456 = vmul.f32 0.5, %v455
    %v457 = vsub.f32 1.5, %v456
    %v458 = vmul.f32 %v453, %v457
    %vm459 = vweird.f32 %v442
    %vm460 = vweird.f32 %v453
    %vm461 = vmor %vm459, %vm460
    %v462 = vsel %vm461, %v453, %v458
    %v463 = vmul.f32 %v425, %v452
    %v464 = vmul.f32 %v426, %v452
    %v465 = vmul.f32 %v427, %v462
    %v466 = vmul.f32 %v428, %v462
    %v467 = vld [vmem:[%s5] sm:$0x3]
    %v469 = vperm.slane %v467, 0
    %v470 = vperm.slane %v467, 1
    %v473 = vmul.f32 %v463, %v469
    %v474 = vmul.f32 %v464, %v470
    %v475 = vmul.f32 %v465, %v469
    %v476 = vmul.f32 %v466, %v470
    %v477 = vld [vmem:[#allocation10] sm:$0x3]
    %v479 = vperm.slane %v477, 0
    %v480 = vperm.slane %v477, 1
    %v483 = vadd.f32 %v473, %v479
    %v484 = vadd.f32 %v474, %v480
    %v485 = vadd.f32 %v475, %v479
    %v486 = vadd.f32 %v476, %v480
    %487 = vst [vmem:[#allocation11] sm:$0xff] %v483
    %488 = vst [vmem:[#allocation11 + $0x8] sm:$0xff] %v484
    %489 = vst [vmem:[#allocation11 + $0x10] sm:$0xff] %v485
    %490 = vst [vmem:[#allocation11 + $0x18] sm:$0xff] %v486
    // Predicated region
    $region50: #{tpu_custom_call.1} parent=1 // pred_check
      _
    $region51: #{tpu_custom_call.1} parent=1 // pred_check_branch
      %492 = sbr.rel (0) target = $region53
    $region52: #{tpu_custom_call.1} parent=1 // pred_region
      %494 = vsyncadd [#allocation4], 0
      %s495 = sshll.u32 [#allocation11], 4
      %s496 = int_to_ptr.vmem [resolvable:$true] %s495
      %s497 = sshll.u32 %s7, 4
      %s498 = int_to_ptr.hbm [resolvable:$true] %s497
      %503 = dma.vmem_to_hbm [thread:$0]  %s496, 512, %s498, [#allocation4], 256, 256, 16
    $region53: #{tpu_custom_call.1} parent=1 // pred_fallthru
      _
    // Predicated region
    $region54: #{tpu_custom_call.1} parent=1 // pred_check
      _
    $region55: #{tpu_custom_call.1} parent=1 // pred_check_branch
      %505 = sbr.rel (0) target = $region57
    $region56: #{tpu_custom_call.1} parent=1 // pred_region
      %507 = dma.done [#allocation4], 512
    $region57: #{tpu_custom_call.1} parent=1 // pred_fallthru
      _
    %508 = vsyncpa [#allocation3], 1
    %509 = vsyncpa [#allocation6], 1
    %510 = vsyncpa [#allocation9], 1
    %511 = vsyncpa [#allocation4], 1

</llo_original>
